<compile_context>
chip_gen: v7x
topology: tpu7x:2x2x1
jax: 0.10.0
libtpu: 0.0.40
codegen_flags: <defaults>
</compile_context>

<pallas_src>
import functools

import jax
import jax.numpy as jnp
from jax.experimental import pallas as pl
from jax.experimental.pallas import tpu as pltpu


def _round_up(x, m):
    return ((x + m - 1) // m) * m


def _metrics_kernel(logits_ref, labels_ref, out_ref, *, total_b, block_rows,
                    need_mask):
    """logits_ref: (C, br, 128) native dtype; labels_ref: (br, 128) int32.

    out_ref: (1, 4, 8, 128) int32 partial counts for this batch tile:
      [corr, corr*true_mask, true_mask, pred_mask].
    """
    x = logits_ref[...]                                   # (C, br, 128)
    lab = labels_ref[...]                                 # (br, 128) int32
    c, br, _ = x.shape

    # argmax over classes.  Axis 0 is the major (untiled) axis, so the max and
    # the first-occurrence index selection are pure per-plane VPU ops.
    m = jnp.max(x, axis=0, keepdims=True)                 # (1, br, 128)
    cls = jax.lax.broadcasted_iota(jnp.int32, x.shape, 0)
    pred = jnp.min(jnp.where(x == m, cls, c), axis=0)     # (br, 128) int32

    corr = pred == lab
    tmask = lab >= 1
    pmask = pred >= 1

    if need_mask:
        # Mask out wrapper batch padding and the grid padding of a partial last
        # block.  Row-level comparison avoids int32 overflow for any batch.
        row = pl.program_id(0) * block_rows + jax.lax.broadcasted_iota(
            jnp.int32, (br, 128), 0)
        lane = jax.lax.broadcasted_iota(jnp.int32, (br, 128), 1)
        full_rows = total_b // 128
        rem = total_b % 128
        valid = jnp.logical_or(
            row < full_rows,
            jnp.logical_and(row == full_rows, lane < rem))
        corr = jnp.logical_and(corr, valid)
        tmask = jnp.logical_and(tmask, valid)
        pmask = jnp.logical_and(pmask, valid)

    ctmask = jnp.logical_and(corr, tmask)

    def fold(b):
        # (br, 128) bool -> (8, 128) int32 partial sums; the reshape is
        # layout-preserving (free) and the sum is a short chain of VPU adds.
        return jnp.sum(b.astype(jnp.int32).reshape(br // 8, 8, 128), axis=0)

    out_ref[0, 0] = fold(corr)
    out_ref[0, 1] = fold(ctmask)
    out_ref[0, 2] = fold(tmask)
    out_ref[0, 3] = fold(pmask)


def metrics_func(logits, labels, *, block_rows=None):
    """logits: [B, C] float (any float dtype), labels: [B] int class ids.

    Returns (acc, precision, f1) as f32 scalars, matching the PyTorch module.
    """
    B, C = logits.shape
    itemsize = jnp.dtype(logits.dtype).itemsize

    # Pad the batch to a multiple of 1024 (= 8 sublanes x 128 lanes) so the
    # class-major relayout below is a transpose + free reshape and every row
    # block is 8-row aligned.  Padded samples are masked out in-kernel.
    Bp = _round_up(B, 1024)
    if Bp != B:
        logits = jnp.pad(logits, ((0, Bp - B), (0, 0)))
        labels = jnp.pad(labels, ((0, Bp - B),))
    R = Bp // 128

    # Single materializing wrapper relayout (see header note on review item 2).
    logits3 = logits.T.reshape(C, R, 128)                 # (C, R, 128), native dtype
    labels2 = labels.astype(jnp.int32).reshape(R, 128)    # (R, 128)

    # Generation-aware VMEM budget (v5e/v6e 128 MiB, v7x 64 MiB physical).
    try:
        vmem_cap = int(pltpu.get_tpu_info().vmem_capacity_bytes)
        if vmem_cap <= 0:
            vmem_cap = 64 * 1024 * 1024
    except Exception:
        vmem_cap = 64 * 1024 * 1024
    vmem_limit = (vmem_cap * 3) // 4
    budget = vmem_limit // 2          # double-buffered input blocks + temps

    # Per-row (128 samples) VMEM cost: double-buffered logits + labels blocks,
    # plus a generous allowance for in-kernel int32/f32 temporaries.
    per_row = (2 * (C * 128 * itemsize + 128 * 4)
               + 3 * C * 128 * 4 + 8 * 128 * 4)
    pack_rows = max(8, 32 // itemsize)        # sublane packing: f32 8, bf16 16, int8 32
    fixed = 2 * C * pack_rows * 128 * itemsize + (1 << 20)
    if block_rows is None:
        block_rows = max(8, ((budget - fixed) // per_row) // 8 * 8)
    block_rows = int(max(8, min(_round_up(block_rows, 8), R)))

    # If even an 8-row block is large (huge C), raise the limit up to physical.
    need = (2 * (C * _round_up(block_rows, pack_rows) * 128 * itemsize
                 + block_rows * 128 * 4)
            + 3 * C * block_rows * 128 * 4 + (2 << 20))
    vmem_limit = int(max(vmem_limit, min(vmem_cap, need)))

    nt = pl.cdiv(R, block_rows)
    need_mask = (Bp != B) or (R % block_rows != 0)

    kernel = functools.partial(_metrics_kernel, total_b=B,
                               block_rows=block_rows, need_mask=need_mask)

    partials = pl.pallas_call(
        kernel,
        out_shape=jax.ShapeDtypeStruct((nt, 4, 8, 128), jnp.int32),
        grid=(nt,),
        in_specs=[
            pl.BlockSpec((C, block_rows, 128), lambda i: (0, i, 0)),
            pl.BlockSpec((block_rows, 128), lambda i: (i, 0)),
        ],
        out_specs=pl.BlockSpec((1, 4, 8, 128), lambda i: (i, 0, 0, 0)),
        compiler_params=pltpu.CompilerParams(
            dimension_semantics=("parallel",),
            vmem_limit_bytes=vmem_limit),
        cost_estimate=pl.CostEstimate(
            flops=8 * Bp * C,
            transcendentals=0,
            bytes_accessed=Bp * C * itemsize + Bp * 4 + nt * 4 * 8 * 128 * 4),
    )(logits3, labels2)

    # Tiny epilogue in JAX: exact int32 totals, then f32 ratio math.
    counts = jnp.sum(partials, axis=(0, 2, 3))            # (4,) int32
    corr_sum = counts[0].astype(jnp.float32)
    corr_true_sum = counts[1].astype(jnp.float32)
    true_sum = counts[2].astype(jnp.float32)
    pred_sum = counts[3].astype(jnp.float32)

    acc = corr_sum / float(B)
    recall = corr_true_sum / (true_sum + 1e-8)
    precision = corr_true_sum / (pred_sum + 1e-8)
    f1 = 2.0 * recall * precision / (recall + precision + 1e-8)
    return acc, precision, f1


def _reference(logits, labels):
    # Pure-JAX reference mirroring the PyTorch module.
    pred = jnp.argmax(logits, axis=-1)
    y_true_mask = jnp.where(labels < 0.5, 0, 1).reshape(-1).astype(jnp.float32)
    y_pred_mask = jnp.where(pred < 0.5, 0, 1).reshape(-1).astype(jnp.float32)
    y_pred = pred.reshape(-1).astype(jnp.float32)
    y_true = labels.reshape(-1).astype(jnp.float32)
    corr = (y_pred == y_true).astype(jnp.float32)
    acc = jnp.sum(corr) / labels.shape[0]
    corr_m = corr * y_true_mask
    recall = jnp.sum(corr_m) / (jnp.sum(y_true_mask) + 1e-8)
    precision = jnp.sum(corr_m) / (jnp.sum(y_pred_mask) + 1e-8)
    f1 = 2 * recall * precision / (recall + precision + 1e-8)
    return acc, precision, f1


if __name__ == "__main__":
    key = jax.random.PRNGKey(0)
    k1, k2, k3, k4 = jax.random.split(key, 4)

    # Case 1: f32 logits, ragged batch (pads to 3072), block_rows forced small
    # so the grid has several parallel steps plus a masked padded region.
    B1, C1 = 2500, 4
    logits1 = jax.random.normal(k1, (B1, C1), dtype=jnp.float32)
    labels1 = jax.random.randint(k2, (B1,), 0, C1, dtype=jnp.int32)
    out1 = metrics_func(logits1, labels1, block_rows=8)
    jax.block_until_ready(out1)
    ref1 = _reference(logits1, labels1)
    for a, b in zip(out1, ref1):
        assert jnp.allclose(a, b, atol=1e-5, rtol=1e-5), (a, b)

    # Case 2: bf16 logits, batch an exact multiple of 1024 (no padding, no
    # in-kernel masking), auto block sizing -> a single large block.
    B2, C2 = 1024, 8
    logits2 = jax.random.normal(k3, (B2, C2), dtype=jnp.bfloat16)
    labels2 = jax.random.randint(k4, (B2,), 0, C2, dtype=jnp.int32)
    out2 = metrics_func(logits2, labels2)
    jax.block_until_ready(out2)
    ref2 = _reference(logits2, labels2)
    for a, b in zip(out2, ref2):
        assert jnp.allclose(a, b, atol=1e-5, rtol=1e-5), (a, b)

    print("KERNEL_OK")
</pallas_src>

<mosaic_0001>
module attributes {stable_mosaic.version = 11 : i64} {
  func.func @_metrics_kernel(%arg0: i32, %arg1: memref<4x8x128xf32, #tpu.memory_space<vmem>>, %arg2: memref<8x128xi32, #tpu.memory_space<vmem>>, %arg3: memref<1x4x8x128xi32, #tpu.memory_space<vmem>>) attributes {dimension_semantics = [#tpu.dimension_semantics<parallel>], iteration_bounds = array<i64: 3>, scalar_prefetch = 0 : i64, scratch_operands = 0 : i64, tpu.core_type = #tpu.core_type<tc>, window_params = [{transform_indices = @transform_0, window_bounds = array<i64: 4, 8, 128>}, {transform_indices = @transform_1, window_bounds = array<i64: 8, 128>}, {transform_indices = @transform_2, window_bounds = array<i64: 1, 4, 8, 128>}]} {
    %c0 = arith.constant 0 : index
    %c0_0 = arith.constant 0 : index
    %c0_1 = arith.constant 0 : index
    %0 = vector.load %arg1[%c0, %c0_0, %c0_1] : memref<4x8x128xf32, #tpu.memory_space<vmem>>, vector<4x8x128xf32>
    %c0_2 = arith.constant 0 : index
    %c0_3 = arith.constant 0 : index
    %1 = vector.load %arg2[%c0_2, %c0_3] : memref<8x128xi32, #tpu.memory_space<vmem>>, vector<8x128xi32>
    %cst = arith.constant dense<0xFF800000> : vector<8x128xf32>
    %2 = vector.multi_reduction <maximumf>, %0, %cst [0] : vector<4x8x128xf32> to vector<8x128xf32>
    %3 = vector.shape_cast %2 : vector<8x128xf32> to vector<1x8x128xf32>
    %4 = tpu.iota {dimensions = array<i32: 0>} : vector<4x8x128xi32>
    %5 = vector.broadcast %3 : vector<1x8x128xf32> to vector<4x8x128xf32>
    %6 = arith.cmpf oeq, %0, %5 : vector<4x8x128xf32>
    %c4_i32 = arith.constant 4 : i32
    %7 = vector.broadcast %c4_i32 : i32 to vector<4x8x128xi32>
    %8 = arith.select %6, %4, %7 : vector<4x8x128xi1>, vector<4x8x128xi32>
    %cst_4 = arith.constant dense<2147483647> : vector<8x128xi32>
    %9 = vector.multi_reduction <minsi>, %8, %cst_4 [0] : vector<4x8x128xi32> to vector<8x128xi32>
    %10 = arith.cmpi eq, %9, %1 : vector<8x128xi32>
    %c1_i32 = arith.constant 1 : i32
    %11 = vector.broadcast %c1_i32 : i32 to vector<8x128xi32>
    %12 = arith.cmpi sge, %1, %11 : vector<8x128xi32>
    %c1_i32_5 = arith.constant 1 : i32
    %13 = vector.broadcast %c1_i32_5 : i32 to vector<8x128xi32>
    %14 = arith.cmpi sge, %9, %13 : vector<8x128xi32>
    %c8_i32 = arith.constant 8 : i32
    %15 = arith.muli %arg0, %c8_i32 : i32
    %16 = tpu.iota {dimensions = array<i32: 0>} : vector<8x128xi32>
    %17 = vector.broadcast %15 : i32 to vector<8x128xi32>
    %18 = arith.addi %17, %16 : vector<8x128xi32>
    %19 = tpu.iota {dimensions = array<i32: 1>} : vector<8x128xi32>
    %c19_i32 = arith.constant 19 : i32
    %20 = vector.broadcast %c19_i32 : i32 to vector<8x128xi32>
    %21 = arith.cmpi slt, %18, %20 : vector<8x128xi32>
    %c19_i32_6 = arith.constant 19 : i32
    %22 = vector.broadcast %c19_i32_6 : i32 to vector<8x128xi32>
    %23 = arith.cmpi eq, %18, %22 : vector<8x128xi32>
    %c68_i32 = arith.constant 68 : i32
    %24 = vector.broadcast %c68_i32 : i32 to vector<8x128xi32>
    %25 = arith.cmpi slt, %19, %24 : vector<8x128xi32>
    %26 = arith.andi %23, %25 : vector<8x128xi1>
    %27 = arith.ori %21, %26 : vector<8x128xi1>
    %28 = arith.andi %10, %27 : vector<8x128xi1>
    %29 = arith.andi %12, %27 : vector<8x128xi1>
    %30 = arith.andi %14, %27 : vector<8x128xi1>
    %31 = arith.andi %28, %29 : vector<8x128xi1>
    %32 = arith.extui %28 : vector<8x128xi1> to vector<8x128xi32>
    %33 = vector.shape_cast %32 : vector<8x128xi32> to vector<1x8x128xi32>
    %cst_7 = arith.constant dense<0> : vector<8x128xi32>
    %34 = vector.multi_reduction <add>, %33, %cst_7 [0] : vector<1x8x128xi32> to vector<8x128xi32>
    %c0_8 = arith.constant 0 : index
    %c0_9 = arith.constant 0 : index
    %c0_10 = arith.constant 0 : index
    %c0_11 = arith.constant 0 : index
    %35 = vector.load %arg3[%c0_8, %c0_9, %c0_10, %c0_11] : memref<1x4x8x128xi32, #tpu.memory_space<vmem>>, vector<1x1x8x128xi32>
    %36 = vector.shape_cast %35 : vector<1x1x8x128xi32> to vector<8x128xi32>
    %37 = vector.shape_cast %34 : vector<8x128xi32> to vector<1x1x8x128xi32>
    tpu.vector_store %arg3[%c0_8, %c0_9, %c0_10, %c0_11], %37 {strides = array<i32>} : memref<1x4x8x128xi32, #tpu.memory_space<vmem>>, vector<1x1x8x128xi32>,
    %38 = arith.extui %31 : vector<8x128xi1> to vector<8x128xi32>
    %39 = vector.shape_cast %38 : vector<8x128xi32> to vector<1x8x128xi32>
    %cst_12 = arith.constant dense<0> : vector<8x128xi32>
    %40 = vector.multi_reduction <add>, %39, %cst_12 [0] : vector<1x8x128xi32> to vector<8x128xi32>
    %c0_13 = arith.constant 0 : index
    %c1 = arith.constant 1 : index
    %c0_14 = arith.constant 0 : index
    %c0_15 = arith.constant 0 : index
    %41 = vector.load %arg3[%c0_13, %c1, %c0_14, %c0_15] : memref<1x4x8x128xi32, #tpu.memory_space<vmem>>, vector<1x1x8x128xi32>
    %42 = vector.shape_cast %41 : vector<1x1x8x128xi32> to vector<8x128xi32>
    %43 = vector.shape_cast %40 : vector<8x128xi32> to vector<1x1x8x128xi32>
    tpu.vector_store %arg3[%c0_13, %c1, %c0_14, %c0_15], %43 {strides = array<i32>} : memref<1x4x8x128xi32, #tpu.memory_space<vmem>>, vector<1x1x8x128xi32>,
    %44 = arith.extui %29 : vector<8x128xi1> to vector<8x128xi32>
    %45 = vector.shape_cast %44 : vector<8x128xi32> to vector<1x8x128xi32>
    %cst_16 = arith.constant dense<0> : vector<8x128xi32>
    %46 = vector.multi_reduction <add>, %45, %cst_16 [0] : vector<1x8x128xi32> to vector<8x128xi32>
    %c0_17 = arith.constant 0 : index
    %c2 = arith.constant 2 : index
    %c0_18 = arith.constant 0 : index
    %c0_19 = arith.constant 0 : index
    %47 = vector.load %arg3[%c0_17, %c2, %c0_18, %c0_19] : memref<1x4x8x128xi32, #tpu.memory_space<vmem>>, vector<1x1x8x128xi32>
    %48 = vector.shape_cast %47 : vector<1x1x8x128xi32> to vector<8x128xi32>
    %49 = vector.shape_cast %46 : vector<8x128xi32> to vector<1x1x8x128xi32>
    tpu.vector_store %arg3[%c0_17, %c2, %c0_18, %c0_19], %49 {strides = array<i32>} : memref<1x4x8x128xi32, #tpu.memory_space<vmem>>, vector<1x1x8x128xi32>,
    %50 = arith.extui %30 : vector<8x128xi1> to vector<8x128xi32>
    %51 = vector.shape_cast %50 : vector<8x128xi32> to vector<1x8x128xi32>
    %cst_20 = arith.constant dense<0> : vector<8x128xi32>
    %52 = vector.multi_reduction <add>, %51, %cst_20 [0] : vector<1x8x128xi32> to vector<8x128xi32>
    %c0_21 = arith.constant 0 : index
    %c3 = arith.constant 3 : index
    %c0_22 = arith.constant 0 : index
    %c0_23 = arith.constant 0 : index
    %53 = vector.load %arg3[%c0_21, %c3, %c0_22, %c0_23] : memref<1x4x8x128xi32, #tpu.memory_space<vmem>>, vector<1x1x8x128xi32>
    %54 = vector.shape_cast %53 : vector<1x1x8x128xi32> to vector<8x128xi32>
    %55 = vector.shape_cast %52 : vector<8x128xi32> to vector<1x1x8x128xi32>
    tpu.vector_store %arg3[%c0_21, %c3, %c0_22, %c0_23], %55 {strides = array<i32>} : memref<1x4x8x128xi32, #tpu.memory_space<vmem>>, vector<1x1x8x128xi32>,
    return
  }
  func.func @transform_0(%arg0: i32) -> (i32, i32, i32) {
    %c0_i32 = arith.constant 0 : i32
    %c0_i32_0 = arith.constant 0 : i32
    %c0_i32_1 = arith.constant 0 : i32
    return %c0_i32, %arg0, %c0_i32_0 : i32, i32, i32
  }
  func.func @transform_1(%arg0: i32) -> (i32, i32) {
    %c0_i32 = arith.constant 0 : i32
    %c0_i32_0 = arith.constant 0 : i32
    return %arg0, %c0_i32 : i32, i32
  }
  func.func @transform_2(%arg0: i32) -> (i32, i32, i32, i32) {
    %c0_i32 = arith.constant 0 : i32
    %c0_i32_0 = arith.constant 0 : i32
    %c0_i32_1 = arith.constant 0 : i32
    %c0_i32_2 = arith.constant 0 : i32
    return %arg0, %c0_i32, %c0_i32_0, %c0_i32_1 : i32, i32, i32, i32
  }
}

</mosaic_0001>

<llo_original>
// kernel: tpu_custom_call.1
$region0: #{tpu_custom_call.1}
  #allocation0 [shape = 'u32[]', space=smem, size = 0x4, offset = 0x4, fixed_abs, tag = 'smem constant byte address 0x4 - core index']
  #allocation1 [shape = 'u32[144,128]{1,0:T(1,128)}', space=vmem, size = 0x12000, scoped, tag = 'internal scratch']
  %s0 = inlined_call_operand.hbm [shape: f32[4,24,128], index: 0, kind: input, shape index: {}]
  %s1 = inlined_call_operand.hbm [shape: s32[24,128], index: 1, kind: input, shape index: {}]
  %s2 = inlined_call_operand.hbm [shape: s32[3,4,8,128], index: 2, kind: output, shape index: {}]
  %s3 = sld [smem:[#allocation0]]
  $region49: #{tpu_custom_call.1} parent=0
    _
  %s5 = ssub.s32 1, %s3
  %s6 = scalar_select 0, %s5, %s3
  $region1: #{tpu_custom_call.1} parent=0
    #allocation2 [shape = 'u8[32768]{0}', space=vmem, size = 0x8000, scoped, tag = 'input window, operand 0']
    #allocation3 [shape = 's32[2]{0}', space=sflag, size = 0x8, scoped, tag = 'scoped memory for tpu_custom_call.1']
    #allocation4 [shape = 's32[2]{0}', space=sflag, size = 0x8, scoped, tag = 'scoped memory for tpu_custom_call.1']
    #allocation5 [shape = 'u8[8192]{0}', space=vmem, size = 0x2000, scoped, tag = 'input window, operand 1']
    #allocation6 [shape = 's32[2]{0}', space=sflag, size = 0x8, scoped, tag = 'scoped memory for tpu_custom_call.1']
    #allocation7 [shape = 'u8[32768]{0}', space=vmem, size = 0x8000, scoped, tag = 'output window, operand 0']
    %7 = vsyncpa [#allocation3], 0
    %s8 = scalar_lea.sflag [#allocation3], 1
    %9 = vsyncpa %s8, 0
    %10 = vsyncpa [#allocation6], 0
    %s11 = scalar_lea.sflag [#allocation6], 1
    %12 = vsyncpa %s11, 0
    %13 = vsyncpa [#allocation4], 0
    %s14 = scalar_lea.sflag [#allocation4], 1
    %15 = vsyncpa %s14, 0
    loop: start=0, step=1, limit=5
    $region2: #{tpu_custom_call.1} parent=1 // loop_pre_header
      _
    $region3: #{tpu_custom_call.1} parent=1 // loop_header
      %s17 = sphi 0, %s21
      %p18 = scmp.ge.s32.totalorder %s17, 5
      %s27 = sphi 0, %s29
      %s30 = sphi 0, %s27
      %s31 = sphi 0, %s30
      %s47 = sphi 0, %s31
      %s53 = sphi 0, %s55
      %s56 = sphi 0, %s53
      %s57 = sphi 0, %s56
      %s73 = sphi 0, %s57
      %s79 = sphi 0, %s81
      %s82 = sphi 0, %s79
      %s83 = sphi 0, %s82
      %s99 = sphi 0, %s83
    $region4: #{tpu_custom_call.1} parent=1 // loop_header_branch
      %20 = sbr.rel (%p18) target = $region8
    $region5: #{tpu_custom_call.1} parent=1 // loop_body
      %s22 = ssub.s32 %s17, 1
      %s23 = ssub.s32 %s17, 2
      %s24 = sadd.s32 %s17, 1
      %s25 = ssub.s32 %s17, %s24
      %p26 = scmp.eq.s32.totalorder %s25, 0
      %s28 = sadd.s32 %s27, 1
      %s29 = scalar_select %p26, %s27, %s28
      %p32 = pneg %p26
      %p33 = scmp.eq.s32.totalorder %s17, 2
      %p34 = por %p32, %p33
      %p35 = scmp.ne.s32.totalorder %s27, %s30
      %p36 = scmp.eq.s32.totalorder %s17, 0
      %p37 = por %p35, %p36
      %p38 = scmp.ne.s32.totalorder %s27, %s30
      %p39 = scmp.eq.s32.totalorder %s22, 2
      %p40 = por %p38, %p39
      %p41 = scmp.ne.s32.totalorder %s30, %s31
      %p42 = scmp.eq.s32.totalorder %s22, 0
      %p43 = por %p41, %p42
      %p44 = scmp.ne.s32.totalorder %s30, %s31
      %p45 = scmp.eq.s32.totalorder %s23, 2
      %p46 = por %p44, %p45
      %p48 = scmp.ne.s32.totalorder %s31, %s47
      %p49 = scmp.eq.s32.totalorder %s23, 0
      %p50 = por %p48, %p49
      %s51 = ssub.s32 %s17, %s24
      %p52 = scmp.eq.s32.totalorder %s51, 0
      %s54 = sadd.s32 %s53, 1
      %s55 = scalar_select %p52, %s53, %s54
      %p58 = pneg %p52
      %p59 = scmp.eq.s32.totalorder %s17, 2
      %p60 = por %p58, %p59
      %p61 = scmp.ne.s32.totalorder %s53, %s56
      %p62 = scmp.eq.s32.totalorder %s17, 0
      %p63 = por %p61, %p62
      %p64 = scmp.ne.s32.totalorder %s53, %s56
      %p65 = scmp.eq.s32.totalorder %s22, 2
      %p66 = por %p64, %p65
      %p67 = scmp.ne.s32.totalorder %s56, %s57
      %p68 = scmp.eq.s32.totalorder %s22, 0
      %p69 = por %p67, %p68
      %p70 = scmp.ne.s32.totalorder %s56, %s57
      %p71 = scmp.eq.s32.totalorder %s23, 2
      %p72 = por %p70, %p71
      %p74 = scmp.ne.s32.totalorder %s57, %s73
      %p75 = scmp.eq.s32.totalorder %s23, 0
      %p76 = por %p74, %p75
      %s77 = ssub.s32 %s17, %s24
      %p78 = scmp.eq.s32.totalorder %s77, 0
      %s80 = sadd.s32 %s79, 1
      %s81 = scalar_select %p78, %s79, %s80
      %p84 = pneg %p78
      %p85 = scmp.eq.s32.totalorder %s17, 2
      %p86 = por %p84, %p85
      %p87 = scmp.ne.s32.totalorder %s79, %s82
      %p88 = scmp.eq.s32.totalorder %s17, 0
      %p89 = por %p87, %p88
      %p90 = scmp.ne.s32.totalorder %s79, %s82
      %p91 = scmp.eq.s32.totalorder %s22, 2
      %p92 = por %p90, %p91
      %p93 = scmp.ne.s32.totalorder %s82, %s83
      %p94 = scmp.eq.s32.totalorder %s22, 0
      %p95 = por %p93, %p94
      %p96 = scmp.ne.s32.totalorder %s82, %s83
      %p97 = scmp.eq.s32.totalorder %s23, 2
      %p98 = por %p96, %p97
      %p100 = scmp.ne.s32.totalorder %s83, %s99
      %p101 = scmp.eq.s32.totalorder %s23, 0
      %p102 = por %p100, %p101
      %p103 = scmp.le.s32.totalorder 1, %s17
      %p104 = scmp.lt.s32.totalorder %s17, 4
      %p105 = pnand %p103, %p104
      %p106 = pneg %p105
      // Predicated region
      $region9: #{tpu_custom_call.1} parent=5 // pred_check
        _
      $region10: #{tpu_custom_call.1} parent=5 // pred_check_branch
        %108 = sbr.rel (%p105) target = $region12
      $region11: #{tpu_custom_call.1} parent=5 // pred_region
        %s109 = ssub.s32 %s17, 1
      $region12: #{tpu_custom_call.1} parent=5 // pred_fallthru
        _
      %p110 = scmp.lt.s32.totalorder %s17, 3
      // Predicated region
      $region13: #{tpu_custom_call.1} parent=5 // pred_check
        %p111 = pneg %p110
      $region14: #{tpu_custom_call.1} parent=5 // pred_check_branch
        %113 = sbr.rel (%p111) target = $region16
      $region15: #{tpu_custom_call.1} parent=5 // pred_region
        // Predicated region
        $region17: #{tpu_custom_call.1} parent=15 // pred_check
          %p114 = pneg %p37
        $region18: #{tpu_custom_call.1} parent=15 // pred_check_branch
          %116 = sbr.rel (%p114) target = $region20
        $region19: #{tpu_custom_call.1} parent=15 // pred_region
          %s117 = sand.u32 %s27, 1
          %s118 = scalar_lea.sflag [#allocation3], %s117
          %s119 = sand.u32 %s27, 1
          %s120 = smul.addr %s119, 32
          %s121 = scalar_lea.vmem [#allocation2], %s120
          %s123 = ssub.s32 512, 512
          %124 = vsyncadd %s118, %s123
          %s125 = smul.addr %s17, 128
          %s126 = scalar_lea.hbm %s0, %s125
          %s127 = sshll.u32 %s121, 4
          %s128 = int_to_ptr.vmem [resolvable:$true] %s127
          %133 = dma.hbm_to_vmem [thread:$0]  %s126, 512, %s128, %s118, 384, 128, 8
        $region20: #{tpu_custom_call.1} parent=15 // pred_fallthru
          _
        // Predicated region
        $region21: #{tpu_custom_call.1} parent=15 // pred_check
          %p134 = pneg %p63
        $region22: #{tpu_custom_call.1} parent=15 // pred_check_branch
          %136 = sbr.rel (%p134) target = $region24
        $region23: #{tpu_custom_call.1} parent=15 // pred_region
          %s137 = sand.u32 %s53, 1
          %s138 = scalar_lea.sflag [#allocation6], %s137
          %s139 = sand.u32 %s53, 1
          %s140 = smul.addr %s139, 8
          %s141 = scalar_lea.vmem [#allocation5], %s140
          %s143 = ssub.s32 128, 128
          %144 = vsyncadd %s138, %s143
          %s145 = smul.addr %s17, 128
          %s146 = scalar_lea.hbm %s1, %s145
          %s148 = sshll.u32 %s141, 4
          %s149 = int_to_ptr.vmem [resolvable:$true] %s148
          %151 = dma.hbm_to_vmem [thread:$0]  %s146, 128, %s149, %s138
        $region24: #{tpu_custom_call.1} parent=15 // pred_fallthru
          _
      $region16: #{tpu_custom_call.1} parent=5 // pred_fallthru
        _
      %p152 = scmp.le.s32.totalorder 1, %s17
      %p153 = scmp.lt.s32.totalorder %s17, 4
      %p154 = pnand %p152, %p153
      %p155 = pneg %p154
      // Predicated region
      $region25: #{tpu_custom_call.1} parent=5 // pred_check
        _
      $region26: #{tpu_custom_call.1} parent=5 // pred_check_branch
        %157 = sbr.rel (%p154) target = $region28
      $region27: #{tpu_custom_call.1} parent=5 // pred_region
        %s158 = ssub.s32 %s17, 1
        %s159 = sand.u32 %s30, 1
        %s160 = scalar_lea.sflag [#allocation3], %s159
        %s161 = sand.u32 %s30, 1
        %s162 = smul.addr %s161, 32
        %s163 = scalar_lea.vmem [#allocation2], %s162
        // Predicated region
        $region29: #{tpu_custom_call.1} parent=27 // pred_check
          %p164 = pneg %p43
        $region30: #{tpu_custom_call.1} parent=27 // pred_check_branch
          %166 = sbr.rel (%p164) target = $region32
        $region31: #{tpu_custom_call.1} parent=27 // pred_region
          %167 = dma.done %s160, 512
        $region32: #{tpu_custom_call.1} parent=27 // pred_fallthru
          _
        %s168 = sand.u32 %s56, 1
        %s169 = scalar_lea.sflag [#allocation6], %s168
        %s170 = sand.u32 %s56, 1
        %s171 = smul.addr %s170, 8
        %s172 = scalar_lea.vmem [#allocation5], %s171
        // Predicated region
        $region33: #{tpu_custom_call.1} parent=27 // pred_check
          %p173 = pneg %p69
        $region34: #{tpu_custom_call.1} parent=27 // pred_check_branch
          %175 = sbr.rel (%p173) target = $region36
        $region35: #{tpu_custom_call.1} parent=27 // pred_region
          %176 = dma.done %s169, 128
        $region36: #{tpu_custom_call.1} parent=27 // pred_fallthru
          _
        %s177 = sand.u32 %s30, 1
        %s178 = scalar_lea.sflag [#allocation3], %s177
        %s179 = sand.u32 %s30, 1
        %s180 = smul.addr %s179, 32
        %s181 = scalar_lea.vmem [#allocation2], %s180
        %p182 = pneg %p43
        %p183 = pneg %p40
        %s184 = sand.u32 %s56, 1
        %s185 = scalar_lea.sflag [#allocation6], %s184
        %s186 = sand.u32 %s56, 1
        %s187 = smul.addr %s186, 8
        %s188 = scalar_lea.vmem [#allocation5], %s187
        %p189 = pneg %p69
        %p190 = pneg %p66
        %p191 = pneg %p95
        %p192 = pneg %p92
        %s193 = sand.u32 %s82, 1
        %s194 = scalar_lea.sflag [#allocation4], %s193
        %s195 = sand.u32 %s82, 1
        %s196 = smul.addr %s195, 32
        %s197 = scalar_lea.vmem [#allocation7], %s196
        %v198 = vld [vmem:[%s163] sm:$0xff]
        %v199 = vld [vmem:[%s163 + $0x8] sm:$0xff]
        %v200 = vld [vmem:[%s163 + $0x10] sm:$0xff]
        %v201 = vld [vmem:[%s163 + $0x18] sm:$0xff]
        %v202 = vld [vmem:[%s172] sm:$0xff]
        %v203 = vmax.f32 %v198, %v199
        %v204 = vmax.f32 %v200, %v201
        %v205 = vmax.f32 %v203, %v204
        %vm206 = vcmp.eq.f32.partialorder %v198, %v205
        %vm207 = vcmp.eq.f32.partialorder %v199, %v205
        %vm208 = vcmp.eq.f32.partialorder %v200, %v205
        %vm209 = vcmp.eq.f32.partialorder %v201, %v205
        %v210 = vsel %vm206, 0, 4
        %v211 = vsel %vm207, 1, 4
        %v212 = vsel %vm208, 2, 4
        %v213 = vsel %vm209, 3, 4
        %vm214 = vcmp.lt.s32.totalorder %v210, %v211
        %v215 = vsel %vm214, %v210, %v211
        %vm216 = vcmp.lt.s32.totalorder %v212, %v213
        %v217 = vsel %vm216, %v212, %v213
        %vm218 = vcmp.lt.s32.totalorder %v215, %v217
        %v219 = vsel %vm218, %v215, %v217
        %vm220 = vcmp.eq.s32.totalorder %v219, %v202
        %vm221 = vcmp.ge.s32.totalorder %v202, 1
        %vm222 = vcmp.ge.s32.totalorder %v219, 1
        %s223 = smul.u32 %s22, 8
        %v224 = vlaneseq
        %v225 = vshrl.u32 %v224, 7
        %v226 = vstv %s223
        %v227 = vadd.s32 %v226, %v225
        %v228 = vlaneseq
        %v229 = vand.u32 %v228, 127
        %vm230 = vcmp.lt.s32.totalorder %v227, 19
        %vm231 = vcmp.eq.s32.totalorder %v227, 19
        %vm232 = vcmp.lt.s32.totalorder %v229, 68
        %vm233 = vmand %vm231, %vm232
        %vm234 = vmor %vm230, %vm233
        %vm235 = vmand %vm220, %vm234
        %vm236 = vmand %vm221, %vm234
        %vm237 = vmand %vm222, %vm234
        %vm238 = vmand %vm235, %vm236
        %v239 = vsel %vm235, 1, 0
        %240 = vst [vmem:[%s197] sm:$0xff] %v239
        %v241 = vsel %vm238, 1, 0
        %s242 = scalar_lea.vmem %s197, 8 [#allocation7]
        %243 = vst [vmem:[%s242] sm:$0xff] %v241
        %v244 = vsel %vm236, 1, 0
        %s245 = scalar_lea.vmem %s197, 16 [#allocation7]
        %246 = vst [vmem:[%s245] sm:$0xff] %v244
        %v247 = vsel %vm237, 1, 0
        %s248 = scalar_lea.vmem %s197, 24 [#allocation7]
        %249 = vst [vmem:[%s248] sm:$0xff] %v247
        %s250 = sand.u32 %s82, 1
        %s251 = scalar_lea.sflag [#allocation4], %s250
        %s252 = sand.u32 %s82, 1
        %s253 = smul.addr %s252, 32
        %s254 = scalar_lea.vmem [#allocation7], %s253
        // Predicated region
        $region37: #{tpu_custom_call.1} parent=27 // pred_check
          %p255 = pneg %p92
        $region38: #{tpu_custom_call.1} parent=27 // pred_check_branch
          %257 = sbr.rel (%p255) target = $region40
        $region39: #{tpu_custom_call.1} parent=27 // pred_region
          %s259 = ssub.s32 512, 512
          %260 = vsyncadd %s251, %s259
          %s261 = smul.addr %s22, 4
          %s262 = smul.addr %s261, 128
          %s263 = scalar_lea.hbm %s2, %s262
          %s264 = sshll.u32 %s254, 4
          %s265 = int_to_ptr.vmem [resolvable:$true] %s264
          %270 = dma.vmem_to_hbm [thread:$0]  %s265, 512, %s263, %s251, 128, 128, 8
        $region40: #{tpu_custom_call.1} parent=27 // pred_fallthru
          _
      $region28: #{tpu_custom_call.1} parent=5 // pred_fallthru
        _
      %p271 = scmp.le.s32.totalorder 2, %s17
      // Predicated region
      $region41: #{tpu_custom_call.1} parent=5 // pred_check
        %p272 = pneg %p271
      $region42: #{tpu_custom_call.1} parent=5 // pred_check_branch
        %274 = sbr.rel (%p272) target = $region44
      $region43: #{tpu_custom_call.1} parent=5 // pred_region
        %s275 = ssub.s32 %s17, 2
        // Predicated region
        $region45: #{tpu_custom_call.1} parent=43 // pred_check
          %p276 = pneg %p98
        $region46: #{tpu_custom_call.1} parent=43 // pred_check_branch
          %278 = sbr.rel (%p276) target = $region48
        $region47: #{tpu_custom_call.1} parent=43 // pred_region
          %s279 = sand.u32 %s83, 1
          %s280 = scalar_lea.sflag [#allocation4], %s279
          %s281 = sand.u32 %s83, 1
          %s282 = smul.addr %s281, 32
          %s283 = scalar_lea.vmem [#allocation7], %s282
          %284 = dma.done %s280, 512
        $region48: #{tpu_custom_call.1} parent=43 // pred_fallthru
          _
      $region44: #{tpu_custom_call.1} parent=5 // pred_fallthru
        _
    $region6: #{tpu_custom_call.1} parent=1 // loop_footer
      %s21 = sadd.s32 1, %s17
    $region7: #{tpu_custom_call.1} parent=1 // loop_footer_branch
      %16 = sbr.rel target = $region3
    $region8: #{tpu_custom_call.1} parent=1 // loop_exit
      _
    %285 = vsyncpa [#allocation3], 1
    %s286 = scalar_lea.sflag [#allocation3], 1
    %287 = vsyncpa %s286, 1
    %288 = vsyncpa [#allocation6], 1
    %s289 = scalar_lea.sflag [#allocation6], 1
    %290 = vsyncpa %s289, 1
    %291 = vsyncpa [#allocation4], 1
    %s292 = scalar_lea.sflag [#allocation4], 1
    %293 = vsyncpa %s292, 1

</llo_original>
